<compile_context>
chip_gen: v6e
topology: v6e:2x2x1
jax: 0.10.0
libtpu: 0.0.40
codegen_flags: <defaults>
</compile_context>

<pallas_src>
import math

import jax
import jax.numpy as jnp
from jax.experimental import pallas as pl
from jax.experimental.pallas import tpu as pltpu


def _rand_sin_posemb_kernel(x_ref, w_ref, o_ref):
    # x_ref: (tile_b, 1) f32, w_ref: (1, half) f32, o_ref: (tile_b, 1 + 2*half) f32.
    x = x_ref[...]                                   # (tile_b, 1)
    w2pi = w_ref[...] * (2.0 * math.pi)              # (1, half)
    arg = x * w2pi                                   # (tile_b, half) via broadcast

    # One wide sin pass: cos(a) == sin(a + pi/2).  Result is already laid out as
    # [sin(arg) | cos(arg)] along lanes, ready for a single packed store.
    both = jnp.concatenate([arg, arg + (0.5 * math.pi)], axis=-1)   # (tile_b, 2*half)
    sc = jnp.sin(both)

    # Single store of the whole tile: [x | sin | cos].  The concat's lane
    # rotates run on the XLU (idle here) instead of inflating the vst count.
    o_ref[...] = jnp.concatenate([x, sc], axis=-1)


def _round_up(n: int, m: int) -> int:
    return ((n + m - 1) // m) * m


def random_or_learned_sinusoidal_pos_emb(x: jax.Array, weights: jax.Array) -> jax.Array:
    """Pallas implementation of RandomOrLearnedSinusoidalPosEmb.forward(x).

    x:       (B,)    control scalars (e.g. diffusion timesteps).
    weights: (half,) the module's random/learned frequency parameter.
    Returns (B, 2*half + 1) float32:  [x | sin(2*pi*x*w) | cos(2*pi*x*w)].
    """
    assert weights.ndim == 1, "weights must be 1-D of size dim // 2"
    half = weights.shape[0]
    dim = 2 * half
    b = x.shape[0]

    x2d = x.astype(jnp.float32).reshape(b, 1)          # (B, 1) column layout
    w2d = weights.astype(jnp.float32).reshape(1, half)  # (1, half), shared per tile

    # Tile selection:
    #  - small B: one full-extent block (overhead-dominated; splitting is pure cost).
    #  - B >= 512: at least 2 grid steps so v7x's two TensorCores both participate,
    #    tile rounded to a multiple of 8 sublanes and capped at 2048 rows
    #    (padded per-step VMEM footprint stays ~4 MiB double-buffered).
    if b <= 512:
        tile_b = b
    else:
        tile_b = min(_round_up(pl.cdiv(b, 2), 8), 2048)
    grid = (pl.cdiv(b, tile_b),)

    cost = pl.CostEstimate(
        flops=4 * b * half,                      # arg mul + pi/2 add + scaling
        transcendentals=2 * b * half,            # one sin per sin/cos output elem
        bytes_accessed=4 * (b + half + b * (dim + 1)),
    )

    out = pl.pallas_call(
        _rand_sin_posemb_kernel,
        out_shape=jax.ShapeDtypeStruct((b, dim + 1), jnp.float32),
        grid=grid,
        in_specs=[
            pl.BlockSpec((tile_b, 1), lambda i: (i, 0)),      # x tile (column)
            pl.BlockSpec((1, half), lambda i: (0, 0)),        # weights (shared, constant map)
        ],
        out_specs=pl.BlockSpec((tile_b, dim + 1), lambda i: (i, 0)),
        compiler_params=pltpu.CompilerParams(
            dimension_semantics=("parallel",),                # shard B tiles across TCs
        ),
        cost_estimate=cost,
    )(x2d, w2d)
    return out


def _reference(x: jax.Array, weights: jax.Array) -> jax.Array:
    x2 = x.astype(jnp.float32)[:, None]
    freqs = x2 * weights.astype(jnp.float32)[None, :] * (2.0 * math.pi)
    return jnp.concatenate([x2, jnp.sin(freqs), jnp.cos(freqs)], axis=-1)


if __name__ == "__main__":
    key = jax.random.PRNGKey(0)
    k_x, k_w, k_x2 = jax.random.split(key, 3)

    B, DIM = 8, 32
    HALF = DIM // 2

    # Continuous diffusion timesteps in [0, 1) and the module's frequency weights.
    x = jax.random.uniform(k_x, (B,), dtype=jnp.float32)
    weights = jax.random.normal(k_w, (HALF,), dtype=jnp.float32)

    out = jax.block_until_ready(random_or_learned_sinusoidal_pos_emb(x, weights))
    ref = _reference(x, weights)
    assert out.shape == (B, DIM + 1), out.shape
    assert jnp.allclose(out, ref, atol=1e-5, rtol=1e-5)

    # Also exercise the multi-step / partial-trailing-tile path (>= 2 grid steps).
    B2 = 1027
    x2 = jax.random.uniform(k_x2, (B2,), dtype=jnp.float32)
    out2 = jax.block_until_ready(random_or_learned_sinusoidal_pos_emb(x2, weights))
    assert out2.shape == (B2, DIM + 1), out2.shape
    assert jnp.allclose(out2, _reference(x2, weights), atol=1e-5, rtol=1e-5)

    print("KERNEL_OK")
</pallas_src>

<mosaic_0001>
module attributes {stable_mosaic.version = 11 : i64} {
  func.func @_rand_sin_posemb_kernel(%arg0: i32, %arg1: memref<8x1xf32, #tpu.memory_space<vmem>>, %arg2: memref<1x16xf32, #tpu.memory_space<vmem>>, %arg3: memref<8x33xf32, #tpu.memory_space<vmem>>) attributes {dimension_semantics = [#tpu.dimension_semantics<parallel>], iteration_bounds = array<i64: 1>, scalar_prefetch = 0 : i64, scratch_operands = 0 : i64, tpu.core_type = #tpu.core_type<tc>, window_params = [{transform_indices = @transform_0, window_bounds = array<i64: 8, 1>}, {pipeline_mode = #tpu.pipeline_mode<synchronous>, transform_indices = @transform_1, window_bounds = array<i64: 1, 16>}, {transform_indices = @transform_2, window_bounds = array<i64: 8, 33>}]} {
    %c0 = arith.constant 0 : index
    %c0_0 = arith.constant 0 : index
    %0 = vector.load %arg1[%c0, %c0_0] : memref<8x1xf32, #tpu.memory_space<vmem>>, vector<8x1xf32>
    %c0_1 = arith.constant 0 : index
    %c0_2 = arith.constant 0 : index
    %1 = vector.load %arg2[%c0_1, %c0_2] : memref<1x16xf32, #tpu.memory_space<vmem>>, vector<1x16xf32>
    %cst = arith.constant 6.28318548 : f32
    %2 = vector.broadcast %cst : f32 to vector<1x16xf32>
    %3 = arith.mulf %1, %2 : vector<1x16xf32>
    %4 = vector.broadcast %0 : vector<8x1xf32> to vector<8x16xf32>
    %5 = vector.broadcast %3 : vector<1x16xf32> to vector<8x16xf32>
    %6 = arith.mulf %4, %5 : vector<8x16xf32>
    %cst_3 = arith.constant 1.57079637 : f32
    %7 = vector.broadcast %cst_3 : f32 to vector<8x16xf32>
    %8 = arith.addf %6, %7 : vector<8x16xf32>
    %9 = tpu.concatenate %6, %8 in 1 : vector<8x16xf32>, vector<8x16xf32> -> vector<8x32xf32>
    %10 = math.sin %9 : vector<8x32xf32>
    %11 = tpu.concatenate %0, %10 in 1 : vector<8x1xf32>, vector<8x32xf32> -> vector<8x33xf32>
    %c0_4 = arith.constant 0 : index
    %c0_5 = arith.constant 0 : index
    %12 = vector.load %arg3[%c0_4, %c0_5] : memref<8x33xf32, #tpu.memory_space<vmem>>, vector<8x33xf32>
    tpu.vector_store %arg3[%c0_4, %c0_5], %11 {strides = array<i32>} : memref<8x33xf32, #tpu.memory_space<vmem>>, vector<8x33xf32>,
    return
  }
  func.func @transform_0(%arg0: i32) -> (i32, i32) {
    %c0_i32 = arith.constant 0 : i32
    %c0_i32_0 = arith.constant 0 : i32
    return %arg0, %c0_i32 : i32, i32
  }
  func.func @transform_1(%arg0: i32) -> (i32, i32) {
    %c0_i32 = arith.constant 0 : i32
    %c0_i32_0 = arith.constant 0 : i32
    %c0_i32_1 = arith.constant 0 : i32
    return %c0_i32, %c0_i32_0 : i32, i32
  }
  func.func @transform_2(%arg0: i32) -> (i32, i32) {
    %c0_i32 = arith.constant 0 : i32
    %c0_i32_0 = arith.constant 0 : i32
    return %arg0, %c0_i32 : i32, i32
  }
}

</mosaic_0001>

<llo_original>
// kernel: tpu_custom_call.1
$region0: #{tpu_custom_call.1}
  #allocation0 [shape = 'u32[]', space=smem, size = 0x4, offset = 0x4, fixed_abs, tag = 'smem constant byte address 0x4 - core index']
  #allocation1 [shape = 'u32[144,128]{1,0:T(1,128)}', space=vmem, size = 0x12000, scoped, tag = 'internal scratch']
  %s0 = inlined_call_operand.vmem [shape: f32[8,1], index: 0, kind: input, shape index: {}]
  %s1 = inlined_call_operand.vmem [shape: f32[1,16], index: 1, kind: input, shape index: {}]
  %s2 = inlined_call_operand.hbm [shape: f32[8,33], index: 2, kind: output, shape index: {}]
  %s3 = sld [smem:[#allocation0]]
  $region18: #{tpu_custom_call.1} parent=0
    _
  %s5 = ssub.s32 1, %s3
  %s6 = scalar_select 0, %s5, %s3
  $region1: #{tpu_custom_call.1} parent=0
    #allocation2 [shape = 'u8[4096]{0}', space=vmem, size = 0x1000, scoped, tag = 'output window, operand 0, single buffered']
    #allocation3 [shape = 's32[1]{0}', space=sflag, size = 0x4, scoped, tag = 'scoped memory for tpu_custom_call.1']
    %7 = vsyncpa [#allocation3], 0
    // Predicated region
    $region2: #{tpu_custom_call.1} parent=1 // pred_check
      _
    $region3: #{tpu_custom_call.1} parent=1 // pred_check_branch
      %9 = sbr.rel (0) target = $region5
    $region4: #{tpu_custom_call.1} parent=1 // pred_region
      _
    $region5: #{tpu_custom_call.1} parent=1 // pred_fallthru
      _
    // Predicated region
    $region6: #{tpu_custom_call.1} parent=1 // pred_check
      _
    $region7: #{tpu_custom_call.1} parent=1 // pred_check_branch
      %11 = sbr.rel (0) target = $region9
    $region8: #{tpu_custom_call.1} parent=1 // pred_region
      _
    $region9: #{tpu_custom_call.1} parent=1 // pred_fallthru
      _
    %v12 = vld [vmem:[%s0] sm:$0xff]
    %v13 = vld [vmem:[%s1] sm:$0x1]
    %v14 = vmul.f32 %v13, 6.2831855
    %16 = vset.pattern.permute.xlu0 0
    %17 = vperm.xlu0 %16, %v12
    %v18 = vpop.permute.xlu0 %17
    %v21 = vlaneseq
    %v22 = vshrl.u32 %v21, 7
    %v23 = vsub.s32 0, %v22
    %v24 = vrot.slane %v14, %v23
    %v26 = vmul.f32 %v18, %v24
    %v27 = vadd.f32 %v26, 1.5707964
    %29 = vrot.lane.b32.xlu0 %v27, 16
    %v30 = vpop.permute.xlu0 %29
    %vm32 = vcmask 130048
    %v33 = vsel %vm32, %v26, %v30
    %v34 = vand.u32 2147483647, %v33
    %vm35 = vcmp.le.f32.partialorder %v34, 0.7853982
    %vm36 = vcmp.lt.s32.totalorder %v33, 0
    %v37 = vand.u32 %v33, 2139095040
    %v38 = vshrl.u32 %v37, 23
    %v39 = vsub.s32 %v38, 127
    %v40 = vand.u32 2147483647, %v33
    %v41 = vand.u32 %v40, 8388607
    %v42 = vor.u32 %v41, 8388608
    %v43 = vsub.s32 0, %v42
    %v44 = vadd.s32 %v39, 1
    %vm45 = vcmp.gt.s32.totalorder %v44, 0
    %v46 = vsel %vm45, %v44, 0
    %v47 = vshrl.u32 %v46, 5
    %v48 = vand.u32 %v46, 31
    %v49 = vsub.s32 32, %v48
    %v50 = vshrl.u32 683565275, %v49
    %v51 = vshll.u32 683565275, %v48
    %v52 = vshrl.u32 2475754826, %v49
    %v53 = vor.u32 %v51, %v52
    %v54 = vshll.u32 2475754826, %v48
    %v55 = vshrl.u32 2131351028, %v49
    %v56 = vor.u32 %v54, %v55
    %v57 = vshll.u32 2131351028, %v48
    %v58 = vshrl.u32 2102212464, %v49
    %v59 = vor.u32 %v57, %v58
    %v60 = vshll.u32 2102212464, %v48
    %v61 = vshrl.u32 920167782, %v49
    %v62 = vor.u32 %v60, %v61
    %v63 = vshll.u32 920167782, %v48
    %v64 = vshrl.u32 1326507024, %v49
    %v65 = vor.u32 %v63, %v64
    %vm66 = vcmp.lt.s32.totalorder %v47, 1
    %vm67 = vcmp.lt.s32.totalorder %v47, 2
    %vm68 = vcmp.lt.s32.totalorder %v47, 3
    %vm69 = vcmp.lt.s32.totalorder %v47, 4
    %v70 = vsel %vm66, %v50, %v53
    %v71 = vsel %vm69, %v59, 2102212464
    %v72 = vsel %vm68, %v56, %v71
    %v73 = vsel %vm67, %v70, %v72
    %v74 = vsel %vm66, %v53, %v56
    %v75 = vsel %vm69, %v62, 920167782
    %v76 = vsel %vm68, %v59, %v75
    %v77 = vsel %vm67, %v74, %v76
    %v78 = vsel %vm66, %v56, %v59
    %v79 = vsel %vm69, %v65, 1326507024
    %v80 = vsel %vm68, %v62, %v79
    %v81 = vsel %vm67, %v78, %v80
    %v82 = vshll.u32 %v42, 8
    %v83 = vmul.u32.u64.compose %v82, %v81
    %v84 = vextract.low.u32 %v83
    %v85 = vextract.high.u32 %v83
    %v86 = vmul.u32.u64.compose %v82, %v77
    %v87 = vextract.low.u32 %v86
    %v88 = vextract.high.u32 %v86
    %v89 = vmul.u32 %v82, %v73
    %v90 = vadd.s32 %v85, %v87
    %vm91 = vc.u32 %v85, %v87
    %v92 = vadd.s32 %v88, 1
    %v93 = vsel %vm91, %v92, %v88
    %v94 = vadd.s32 %v89, %v93
    %v95 = vadd.s32 %v94, 536870912
    %v96 = vshrl.u32 %v95, 30
    %v97 = vshll.u32 %v96, 30
    %v98 = vsub.s32 %v94, %v97
    %vm99 = vcmp.lt.s32.totalorder %v98, 0
    %v100 = vsub.s32 0, %v98
    %v101 = vsel %vm99, %v100, %v98
    %v102 = vclz %v101
    %v103 = vsub.s32 %v102, 2
    %vm104 = vcmp.gt.s32.totalorder 0, %v103
    %v105 = vsel %vm104, 0, %v103
    %v106 = vsub.s32 32, %v105
    %v107 = vshll.u32 %v98, %v105
    %v108 = vshrl.u32 %v90, %v106
    %v109 = vor.u32 %v107, %v108
    %v110 = vsub.s32 4294967266, %v105
    %v111 = vadd.s32 %v110, 127
    %v112 = vshll.u32 %v111, 23
    %v113 = vor.u32 4788187, %v112
    %v114 = vand.u32 2147483647, %v113
    %v116 = vcvt.s32.f32 %v109
    %v117 = vmul.f32 %v116, %v114
    %v118 = vxor.u32 %v117, 2147483648
    %v119 = vsel %vm36, %v118, %v117
    %v120 = vsub.s32 4, %v96
    %v121 = vsel %vm36, %v120, %v96
    %v122 = vsel %vm35, %v33, %v119
    %v123 = vsel %vm35, 0, %v121
    %v124 = vcosq.f32.pop %v122
    %v125 = vsinq.f32.pop %v122
    %vm126 = vweird.f32 %v33
    %v127 = vadd.s32 %v123, 3
    %v128 = vand.u32 %v127, 3
    %vm129 = vcmp.lt.s32.totalorder %v128, 2
    %vm130 = vcmp.eq.s32.totalorder %v128, 0
    %v131 = vxor.u32 %v125, 2147483648
    %v132 = vsel %vm130, %v124, %v131
    %vm133 = vcmp.eq.s32.totalorder %v128, 2
    %v134 = vxor.u32 %v124, 2147483648
    %v135 = vsel %vm133, %v134, %v125
    %v136 = vsel %vm129, %v132, %v135
    %v137 = vsel %vm126, nan, %v136
    %139 = vrot.lane.b32.xlu0 %v137, 1
    %v140 = vpop.permute.xlu0 %139
    %vm142 = vcmask 7168
    %v143 = vsel %vm142, %v12, %v140
    %vm144 = vcmask 269312
    %145 = vst.msk [vmem:[#allocation2] sm:$0xff] %vm144, %v143
    // Predicated region
    $region10: #{tpu_custom_call.1} parent=1 // pred_check
      _
    $region11: #{tpu_custom_call.1} parent=1 // pred_check_branch
      %147 = sbr.rel (0) target = $region13
    $region12: #{tpu_custom_call.1} parent=1 // pred_region
      %s149 = ssub.s32 128, 128
      %150 = vsyncadd [#allocation3], %s149
      %s152 = sshll.u32 [#allocation2], 4
      %s153 = int_to_ptr.vmem [resolvable:$true] %s152
      %155 = dma.vmem_to_hbm [thread:$0]  %s153, 128, %s2, [#allocation3]
    $region13: #{tpu_custom_call.1} parent=1 // pred_fallthru
      _
    // Predicated region
    $region14: #{tpu_custom_call.1} parent=1 // pred_check
      _
    $region15: #{tpu_custom_call.1} parent=1 // pred_check_branch
      %157 = sbr.rel (0) target = $region17
    $region16: #{tpu_custom_call.1} parent=1 // pred_region
      %158 = dma.done [#allocation3], 128
    $region17: #{tpu_custom_call.1} parent=1 // pred_fallthru
      _
    %159 = vsyncpa [#allocation3], 1

</llo_original>
